<compile_context>
chip_gen: v7x
topology: tpu7x:2x2x1
jax: 0.10.0
libtpu: 0.0.40
codegen_flags: <defaults>
</compile_context>

<pallas_src>
import functools

import jax
import jax.numpy as jnp
from jax.experimental import pallas as pl
from jax.experimental.pallas import tpu as pltpu


def _gmof_kernel(x_ref, o_ref, *, rho_sq):
    # Elementwise x^2 / (x^2 + rho^2), computed in f32 for precision with
    # 16-bit inputs.  Exact divide is kept (results match the reference to
    # 1e-6); pl.reciprocal(approx=True) could shave VALU work if this were
    # ever fused with heavier VPU code, but this kernel is HBM-bound anyway.
    x = x_ref[...].astype(jnp.float32)
    sq = x * x
    o_ref[...] = (sq / (sq + rho_sq)).astype(o_ref.dtype)


_LANE_CANDIDATES = (4096, 2048, 1024, 512, 256, 128)
_TARGET_TILE_BYTES = 2 * 1024 * 1024  # per-buffer tile; in+out double-buffered
                                      # -> ~8 MiB, under every gen's scoped VMEM.


def _choose_lane(n: int):
    """Widest lane-dense slab width (multiple of 128) that needs no padding."""
    for cand in _LANE_CANDIDATES:
        if n % cand == 0:
            return cand, 0
    lane = 1024
    return lane, (-n) % lane


def _choose_row_tile(n_rows: int, lane: int, itemsize: int) -> int:
    """Multi-MiB row tiles; ragged last block allowed; >=2 steps when possible."""
    # Sublane alignment: 8 rows for 32-bit, 16 for 16-bit, 32 for 8-bit dtypes.
    sub = 8 if itemsize >= 4 else (16 if itemsize == 2 else 32)
    target_rows = max(sub, _TARGET_TILE_BYTES // (lane * itemsize))
    target_rows -= target_rows % sub
    if n_rows > target_rows:
        return target_rows
    # Everything fits in one block; split into ~2 aligned blocks so a v7x
    # megacore can shard the "parallel" grid axis across both TensorCores.
    if n_rows >= 2 * sub:
        half = -(-n_rows // 2)            # ceil(n_rows / 2)
        half = -(-half // sub) * sub      # round up to sublane multiple
        if half < n_rows:
            return half
    return n_rows  # single full-array block (exempt from the (8,128) rule)


def gmof(residual: jax.Array, rho: float = 100.0) -> jax.Array:
    """Pallas TPU implementation of GMOF.forward."""
    orig_shape = residual.shape
    orig_dtype = residual.dtype
    n = residual.size
    if n == 0:
        return residual

    lane, pad = _choose_lane(n)
    flat = residual.reshape(-1)
    if pad:
        # Single pad pass only when the element count is not 128-aligned.
        flat = jnp.pad(flat, (0, pad))
    n_rows = flat.size // lane
    x2d = flat.reshape(n_rows, lane)

    itemsize = jnp.dtype(orig_dtype).itemsize
    tr = _choose_row_tile(n_rows, lane, itemsize)
    grid = (pl.cdiv(n_rows, tr),)

    # rho_sq is baked in at trace time (recompiles per distinct rho value,
    # which matches the nn.Module holding rho as a construction constant).
    kernel = functools.partial(_gmof_kernel, rho_sq=float(rho) ** 2)

    out2d = pl.pallas_call(
        kernel,
        out_shape=jax.ShapeDtypeStruct((n_rows, lane), orig_dtype),
        grid=grid,
        in_specs=[pl.BlockSpec((tr, lane), lambda i: (i, 0))],
        out_specs=pl.BlockSpec((tr, lane), lambda i: (i, 0)),
        compiler_params=pltpu.CompilerParams(
            dimension_semantics=("parallel",),
        ),
    )(x2d)

    if pad:
        return out2d.reshape(-1)[:n].reshape(orig_shape)
    return out2d.reshape(orig_shape)


if __name__ == "__main__":
    key = jax.random.PRNGKey(0)
    # NCHW input matching the PyTorch module usage, small shapes.
    x = jax.random.normal(key, (2, 4, 16, 16), dtype=jnp.float32) * 50.0

    rho = 100.0
    y = jax.block_until_ready(gmof(x, rho=rho))

    # Reference (plain JAX) check.
    sq = x * x
    y_ref = sq / (sq + rho ** 2)
    assert y.shape == x.shape and y.dtype == x.dtype
    assert jnp.allclose(y, y_ref, atol=1e-6, rtol=1e-6)

    print("KERNEL_OK")
</pallas_src>

<mosaic_0001>
module attributes {stable_mosaic.version = 11 : i64} {
  func.func @_gmof_kernel(%arg0: i32, %arg1: memref<1x2048xf32, #tpu.memory_space<vmem>>, %arg2: memref<1x2048xf32, #tpu.memory_space<vmem>>) attributes {dimension_semantics = [#tpu.dimension_semantics<parallel>], iteration_bounds = array<i64: 1>, scalar_prefetch = 0 : i64, scratch_operands = 0 : i64, tpu.core_type = #tpu.core_type<tc>, window_params = [{transform_indices = @transform_0, window_bounds = array<i64: 1, 2048>}, {transform_indices = @transform_1, window_bounds = array<i64: 1, 2048>}]} {
    %c0 = arith.constant 0 : index
    %c0_0 = arith.constant 0 : index
    %0 = vector.load %arg1[%c0, %c0_0] : memref<1x2048xf32, #tpu.memory_space<vmem>>, vector<1x2048xf32>
    %1 = arith.mulf %0, %0 : vector<1x2048xf32>
    %cst = arith.constant 1.000000e+04 : f32
    %2 = vector.broadcast %cst : f32 to vector<1x2048xf32>
    %3 = arith.addf %1, %2 : vector<1x2048xf32>
    %4 = arith.divf %1, %3 : vector<1x2048xf32>
    %c0_1 = arith.constant 0 : index
    %c0_2 = arith.constant 0 : index
    %5 = vector.load %arg2[%c0_1, %c0_2] : memref<1x2048xf32, #tpu.memory_space<vmem>>, vector<1x2048xf32>
    tpu.vector_store %arg2[%c0_1, %c0_2], %4 {strides = array<i32>} : memref<1x2048xf32, #tpu.memory_space<vmem>>, vector<1x2048xf32>,
    return
  }
  func.func @transform_0(%arg0: i32) -> (i32, i32) {
    %c0_i32 = arith.constant 0 : i32
    %c0_i32_0 = arith.constant 0 : i32
    return %arg0, %c0_i32 : i32, i32
  }
  func.func @transform_1(%arg0: i32) -> (i32, i32) {
    %c0_i32 = arith.constant 0 : i32
    %c0_i32_0 = arith.constant 0 : i32
    return %arg0, %c0_i32 : i32, i32
  }
}

</mosaic_0001>

<llo_original>
// kernel: tpu_custom_call.1
$region0: #{tpu_custom_call.1}
  #allocation0 [shape = 'u32[]', space=smem, size = 0x4, offset = 0x4, fixed_abs, tag = 'smem constant byte address 0x4 - core index']
  #allocation1 [shape = 'u32[144,128]{1,0:T(1,128)}', space=vmem, size = 0x12000, scoped, tag = 'internal scratch']
  %s0 = inlined_call_operand.hbm [shape: f32[1,2048], index: 0, kind: input, shape index: {}]
  %s1 = inlined_call_operand.hbm [shape: f32[1,2048], index: 1, kind: output, shape index: {}]
  %s2 = sld [smem:[#allocation0]]
  $region18: #{tpu_custom_call.1} parent=0
    _
  %s4 = ssub.s32 1, %s2
  %s5 = scalar_select 0, %s4, %s2
  $region1: #{tpu_custom_call.1} parent=0
    #allocation2 [shape = 'u8[8192]{0}', space=vmem, size = 0x2000, scoped, tag = 'input window, operand 0, single buffered']
    #allocation3 [shape = 's32[1]{0}', space=sflag, size = 0x4, scoped, tag = 'scoped memory for tpu_custom_call.1']
    #allocation4 [shape = 's32[1]{0}', space=sflag, size = 0x4, scoped, tag = 'scoped memory for tpu_custom_call.1']
    #allocation5 [shape = 'u8[8192]{0}', space=vmem, size = 0x2000, scoped, tag = 'output window, operand 0, single buffered']
    %6 = vsyncpa [#allocation3], 0
    %7 = vsyncpa [#allocation4], 0
    // Predicated region
    $region2: #{tpu_custom_call.1} parent=1 // pred_check
      _
    $region3: #{tpu_custom_call.1} parent=1 // pred_check_branch
      %9 = sbr.rel (0) target = $region5
    $region4: #{tpu_custom_call.1} parent=1 // pred_region
      %s11 = ssub.s32 256, 256
      %12 = vsyncadd [#allocation3], %s11
      %s14 = sshll.u32 [#allocation2], 4
      %s15 = int_to_ptr.vmem [resolvable:$true] %s14
      %17 = dma.hbm_to_vmem [thread:$0]  %s0, 256, %s15, [#allocation3]
    $region5: #{tpu_custom_call.1} parent=1 // pred_fallthru
      _
    // Predicated region
    $region6: #{tpu_custom_call.1} parent=1 // pred_check
      _
    $region7: #{tpu_custom_call.1} parent=1 // pred_check_branch
      %19 = sbr.rel (0) target = $region9
    $region8: #{tpu_custom_call.1} parent=1 // pred_region
      %20 = dma.done [#allocation3], 256
    $region9: #{tpu_custom_call.1} parent=1 // pred_fallthru
      _
    %v21 = vld [vmem:[#allocation2] sm:$0xff]
    %v22 = vld [vmem:[#allocation2 + $0x8] sm:$0xff]
    %v23 = vmul.f32 %v21, %v21
    %v24 = vmul.f32 %v22, %v22
    %v25 = vadd.f32 %v23, 10000.0
    %v26 = vadd.f32 %v24, 10000.0
    %v27 = vrcp.pop %v25
    %v28 = vmul.f32 %v23, %v27
    %v29 = vrcp.pop %v26
    %v30 = vmul.f32 %v24, %v29
    %31 = vst [vmem:[#allocation5] sm:$0xff] %v28
    %32 = vst [vmem:[#allocation5 + $0x8] sm:$0xff] %v30
    // Predicated region
    $region10: #{tpu_custom_call.1} parent=1 // pred_check
      _
    $region11: #{tpu_custom_call.1} parent=1 // pred_check_branch
      %34 = sbr.rel (0) target = $region13
    $region12: #{tpu_custom_call.1} parent=1 // pred_region
      %s36 = ssub.s32 256, 256
      %37 = vsyncadd [#allocation4], %s36
      %s39 = sshll.u32 [#allocation5], 4
      %s40 = int_to_ptr.vmem [resolvable:$true] %s39
      %42 = dma.vmem_to_hbm [thread:$0]  %s40, 256, %s1, [#allocation4]
    $region13: #{tpu_custom_call.1} parent=1 // pred_fallthru
      _
    // Predicated region
    $region14: #{tpu_custom_call.1} parent=1 // pred_check
      _
    $region15: #{tpu_custom_call.1} parent=1 // pred_check_branch
      %44 = sbr.rel (0) target = $region17
    $region16: #{tpu_custom_call.1} parent=1 // pred_region
      %45 = dma.done [#allocation4], 256
    $region17: #{tpu_custom_call.1} parent=1 // pred_fallthru
      _
    %46 = vsyncpa [#allocation3], 1
    %47 = vsyncpa [#allocation4], 1

</llo_original>
